<compile_context>
chip_gen: v7x
topology: tpu7x:2x2x1
jax: 0.10.0
libtpu: 0.0.40
codegen_flags: <defaults>
</compile_context>

<pallas_src>
import jax
import jax.numpy as jnp
from jax.experimental import pallas as pl
from jax.experimental.pallas import tpu as pltpu


def policy_kernel(xT_ref, w1T_ref, b1_ref, w2T_ref, b2_ref, oT_ref):
    # xT : (IN_P, tb)  bf16   (feature rows, batch in lanes; padded rows are 0)
    # w1T: (HID, IN_P) bf16   (resident)
    # b1 : (HID, 1)    f32    (resident)
    # w2T: (OUT, HID)  bf16   (resident)
    # b2 : (OUT, 1)    f32    (resident)
    # oT : (OUT, tb)   f32    (lane-dense output tile)
    h = jnp.dot(w1T_ref[...], xT_ref[...],
                preferred_element_type=jnp.float32)           # (HID, tb) f32 acc
    h = jnp.maximum(h + b1_ref[...], 0.0)                     # bias + ReLU (VPU)
    logits = jnp.dot(w2T_ref[...], h.astype(w2T_ref.dtype),
                     preferred_element_type=jnp.float32)      # (OUT, tb)
    logits = logits + b2_ref[...]
    # Numerically-stable softmax over the output dim (axis 0 in this layout).
    m = jnp.max(logits, axis=0, keepdims=True)
    e = jnp.exp(logits - m)
    denom = jnp.sum(e, axis=0, keepdims=True)
    # Exact divide so rows sum to 1 (approx reciprocal was not accurate enough).
    oT_ref[...] = (e / denom).astype(oT_ref.dtype)


def policy_forward(x, w1, b1, w2, b2, *, tile_b=16384, compute_dtype=jnp.bfloat16):
    """x: (B, 27) -> probabilities (B, 9), f32.  w1:(27,64) b1:(...,64) w2:(64,9) b2:(...,9)."""
    B, in_size = x.shape
    hid = w1.shape[1]
    out_size = w2.shape[1]

    # Pad the feature dim to a multiple of 32 (bf16 sublane packing) in the
    # transposed layout; the padded x rows / W1^T columns are zero, so the
    # matmul result is unchanged.
    in_p = ((in_size + 31) // 32) * 32

    # Batch lives in the lane dim -> tile must be a multiple of 128.
    tb = min(int(tile_b), ((B + 127) // 128) * 128)
    tb = max(((tb + 127) // 128) * 128, 128)
    num_tiles = -(-B // tb)                 # static ceil-div
    Bp = num_tiles * tb

    # Wrapper-side layout plumbing (transpose + zero-pad), bf16 for the
    # HBM-heavy operands, f32 biases.  Padded batch columns see logits == b2,
    # i.e. a valid (non-NaN) softmax, and are sliced off below.
    xT = jnp.zeros((in_p, Bp), compute_dtype)
    xT = xT.at[:in_size, :B].set(x.T.astype(compute_dtype))
    w1T = jnp.zeros((hid, in_p), compute_dtype)
    w1T = w1T.at[:, :in_size].set(w1.T.astype(compute_dtype))
    w2T = w2.T.astype(compute_dtype)
    b1c = jnp.reshape(b1, (hid, 1)).astype(jnp.float32)
    b2c = jnp.reshape(b2, (out_size, 1)).astype(jnp.float32)

    outT = pl.pallas_call(
        policy_kernel,
        out_shape=jax.ShapeDtypeStruct((out_size, Bp), jnp.float32),
        grid_spec=pltpu.PrefetchScalarGridSpec(
            num_scalar_prefetch=0,
            grid=(num_tiles,),
            in_specs=[
                pl.BlockSpec((in_p, tb), lambda i: (0, i)),        # x^T tile: streamed
                pl.BlockSpec((hid, in_p), lambda i: (0, 0)),       # W1^T: resident
                pl.BlockSpec((hid, 1), lambda i: (0, 0)),          # b1:   resident
                pl.BlockSpec((out_size, hid), lambda i: (0, 0)),   # W2^T: resident
                pl.BlockSpec((out_size, 1), lambda i: (0, 0)),     # b2:   resident
            ],
            out_specs=pl.BlockSpec((out_size, tb), lambda i: (0, i)),
        ),
        compiler_params=pltpu.CompilerParams(
            dimension_semantics=("parallel",),   # lets v7x shard the batch grid over 2 TCs
        ),
    )(xT, w1T, b1c, w2T, b2c)
    return outT[:, :B].T                        # back to (B, 9)


def init_params(key, input_size=27, hidden_size=64, output_size=9):
    # Deterministic init mimicking nn.Linear's default U(-1/sqrt(fan_in), 1/sqrt(fan_in)).
    k1, k2, k3, k4 = jax.random.split(key, 4)
    lim1 = 1.0 / jnp.sqrt(jnp.float32(input_size))
    lim2 = 1.0 / jnp.sqrt(jnp.float32(hidden_size))
    w1 = jax.random.uniform(k1, (input_size, hidden_size), jnp.float32, -lim1, lim1)
    b1 = jax.random.uniform(k2, (1, hidden_size), jnp.float32, -lim1, lim1)
    w2 = jax.random.uniform(k3, (hidden_size, output_size), jnp.float32, -lim2, lim2)
    b2 = jax.random.uniform(k4, (1, output_size), jnp.float32, -lim2, lim2)
    return w1, b1, w2, b2


def _reference(x, w1, b1, w2, b2, compute_dtype=jnp.bfloat16):
    # Pure-JAX reference following the same precision path as the kernel.
    xr = x.astype(compute_dtype)
    w1r = w1.astype(compute_dtype)
    w2r = w2.astype(compute_dtype)
    h = jnp.maximum(jnp.dot(xr, w1r, preferred_element_type=jnp.float32)
                    + b1.reshape(1, -1), 0.0)
    logits = jnp.dot(h.astype(compute_dtype), w2r,
                     preferred_element_type=jnp.float32) + b2.reshape(1, -1)
    return jax.nn.softmax(logits, axis=-1)


if __name__ == "__main__":
    key = jax.random.PRNGKey(0)
    kx, kp, kx2 = jax.random.split(key, 3)

    B, IN, HID, OUT = 8, 27, 64, 9
    # Tic-tac-toe states are one-hot 3x9 = 27-dim; random floats are fine here.
    x = jax.random.normal(kx, (B, IN), jnp.float32)
    w1, b1, w2, b2 = init_params(kp, IN, HID, OUT)

    # Small-batch call (single tile, batch padded 8 -> 128 lanes).
    out = jax.block_until_ready(policy_forward(x, w1, b1, w2, b2))
    ref = _reference(x, w1, b1, w2, b2)
    assert out.shape == (B, OUT)
    assert jnp.allclose(out, ref, atol=2e-3, rtol=2e-3)
    assert jnp.allclose(jnp.sum(out, axis=-1), 1.0, atol=1e-3)

    # Multi-tile call exercising the batch grid + padding path (tile_b=128, B=200 -> 2 tiles).
    B2 = 200
    x2 = jax.random.normal(kx2, (B2, IN), jnp.float32)
    out2 = jax.block_until_ready(policy_forward(x2, w1, b1, w2, b2, tile_b=128))
    ref2 = _reference(x2, w1, b1, w2, b2)
    assert out2.shape == (B2, OUT)
    assert jnp.allclose(out2, ref2, atol=2e-3, rtol=2e-3)
    assert jnp.allclose(jnp.sum(out2, axis=-1), 1.0, atol=1e-3)

    print("KERNEL_OK")
</pallas_src>

<mosaic_0001>
module attributes {stable_mosaic.version = 11 : i64} {
  func.func @policy_kernel(%arg0: i32, %arg1: memref<32x128xbf16, #tpu.memory_space<vmem>>, %arg2: memref<64x32xbf16, #tpu.memory_space<vmem>>, %arg3: memref<64x1xf32, #tpu.memory_space<vmem>>, %arg4: memref<9x64xbf16, #tpu.memory_space<vmem>>, %arg5: memref<9x1xf32, #tpu.memory_space<vmem>>, %arg6: memref<9x128xf32, #tpu.memory_space<vmem>>) attributes {dimension_semantics = [#tpu.dimension_semantics<parallel>], iteration_bounds = array<i64: 1>, scalar_prefetch = 0 : i64, scratch_operands = 0 : i64, tpu.core_type = #tpu.core_type<tc>, window_params = [{transform_indices = @transform_0, window_bounds = array<i64: 32, 128>}, {pipeline_mode = #tpu.pipeline_mode<synchronous>, transform_indices = @transform_1, window_bounds = array<i64: 64, 32>}, {pipeline_mode = #tpu.pipeline_mode<synchronous>, transform_indices = @transform_2, window_bounds = array<i64: 64, 1>}, {pipeline_mode = #tpu.pipeline_mode<synchronous>, transform_indices = @transform_3, window_bounds = array<i64: 9, 64>}, {pipeline_mode = #tpu.pipeline_mode<synchronous>, transform_indices = @transform_4, window_bounds = array<i64: 9, 1>}, {transform_indices = @transform_5, window_bounds = array<i64: 9, 128>}]} {
    %c0 = arith.constant 0 : index
    %c0_0 = arith.constant 0 : index
    %0 = vector.load %arg2[%c0, %c0_0] : memref<64x32xbf16, #tpu.memory_space<vmem>>, vector<64x32xbf16>
    %c0_1 = arith.constant 0 : index
    %c0_2 = arith.constant 0 : index
    %1 = vector.load %arg1[%c0_1, %c0_2] : memref<32x128xbf16, #tpu.memory_space<vmem>>, vector<32x128xbf16>
    %cst = arith.constant dense<0.000000e+00> : vector<64x128xf32>
    %2 = tpu.matmul %0, %1, %cst {dimension_numbers = #tpu.dot_dimension_numbers<[1], [0], [0], [1], [0, 0, 1, 1], [], []>} : vector<64x32xbf16>, vector<32x128xbf16>, vector<64x128xf32> -> vector<64x128xf32>
    %c0_3 = arith.constant 0 : index
    %c0_4 = arith.constant 0 : index
    %3 = vector.load %arg3[%c0_3, %c0_4] : memref<64x1xf32, #tpu.memory_space<vmem>>, vector<64x1xf32>
    %4 = vector.broadcast %3 : vector<64x1xf32> to vector<64x128xf32>
    %5 = arith.addf %2, %4 : vector<64x128xf32>
    %cst_5 = arith.constant 0.000000e+00 : f32
    %6 = vector.broadcast %cst_5 : f32 to vector<64x128xf32>
    %7 = arith.maximumf %5, %6 : vector<64x128xf32>
    %c0_6 = arith.constant 0 : index
    %c0_7 = arith.constant 0 : index
    %8 = vector.load %arg4[%c0_6, %c0_7] : memref<9x64xbf16, #tpu.memory_space<vmem>>, vector<9x64xbf16>
    %9 = arith.truncf %7 : vector<64x128xf32> to vector<64x128xbf16>
    %cst_8 = arith.constant dense<0.000000e+00> : vector<9x128xf32>
    %10 = tpu.matmul %8, %9, %cst_8 {dimension_numbers = #tpu.dot_dimension_numbers<[1], [0], [0], [1], [0, 0, 1, 1], [], []>} : vector<9x64xbf16>, vector<64x128xbf16>, vector<9x128xf32> -> vector<9x128xf32>
    %c0_9 = arith.constant 0 : index
    %c0_10 = arith.constant 0 : index
    %11 = vector.load %arg5[%c0_9, %c0_10] : memref<9x1xf32, #tpu.memory_space<vmem>>, vector<9x1xf32>
    %12 = vector.broadcast %11 : vector<9x1xf32> to vector<9x128xf32>
    %13 = arith.addf %10, %12 : vector<9x128xf32>
    %cst_11 = arith.constant dense<0xFF800000> : vector<128xf32>
    %14 = vector.multi_reduction <maximumf>, %13, %cst_11 [0] : vector<9x128xf32> to vector<128xf32>
    %15 = vector.shape_cast %14 : vector<128xf32> to vector<1x128xf32>
    %16 = vector.broadcast %15 : vector<1x128xf32> to vector<9x128xf32>
    %17 = arith.subf %13, %16 : vector<9x128xf32>
    %18 = math.exp %17 : vector<9x128xf32>
    %cst_12 = arith.constant dense<0.000000e+00> : vector<128xf32>
    %19 = vector.multi_reduction <add>, %18, %cst_12 [0] : vector<9x128xf32> to vector<128xf32>
    %20 = vector.shape_cast %19 : vector<128xf32> to vector<1x128xf32>
    %21 = vector.broadcast %20 : vector<1x128xf32> to vector<9x128xf32>
    %22 = arith.divf %18, %21 : vector<9x128xf32>
    %c0_13 = arith.constant 0 : index
    %c0_14 = arith.constant 0 : index
    %23 = vector.load %arg6[%c0_13, %c0_14] : memref<9x128xf32, #tpu.memory_space<vmem>>, vector<9x128xf32>
    tpu.vector_store %arg6[%c0_13, %c0_14], %22 {strides = array<i32>} : memref<9x128xf32, #tpu.memory_space<vmem>>, vector<9x128xf32>,
    return
  }
  func.func @transform_0(%arg0: i32) -> (i32, i32) {
    %c0_i32 = arith.constant 0 : i32
    %c0_i32_0 = arith.constant 0 : i32
    return %c0_i32, %arg0 : i32, i32
  }
  func.func @transform_1(%arg0: i32) -> (i32, i32) {
    %c0_i32 = arith.constant 0 : i32
    %c0_i32_0 = arith.constant 0 : i32
    %c0_i32_1 = arith.constant 0 : i32
    return %c0_i32, %c0_i32_0 : i32, i32
  }
  func.func @transform_2(%arg0: i32) -> (i32, i32) {
    %c0_i32 = arith.constant 0 : i32
    %c0_i32_0 = arith.constant 0 : i32
    %c0_i32_1 = arith.constant 0 : i32
    return %c0_i32, %c0_i32_0 : i32, i32
  }
  func.func @transform_3(%arg0: i32) -> (i32, i32) {
    %c0_i32 = arith.constant 0 : i32
    %c0_i32_0 = arith.constant 0 : i32
    %c0_i32_1 = arith.constant 0 : i32
    return %c0_i32, %c0_i32_0 : i32, i32
  }
  func.func @transform_4(%arg0: i32) -> (i32, i32) {
    %c0_i32 = arith.constant 0 : i32
    %c0_i32_0 = arith.constant 0 : i32
    %c0_i32_1 = arith.constant 0 : i32
    return %c0_i32, %c0_i32_0 : i32, i32
  }
  func.func @transform_5(%arg0: i32) -> (i32, i32) {
    %c0_i32 = arith.constant 0 : i32
    %c0_i32_0 = arith.constant 0 : i32
    return %c0_i32, %arg0 : i32, i32
  }
}

</mosaic_0001>

<llo_original>
// kernel: tpu_custom_call.1
$region0: #{tpu_custom_call.1}
  #allocation0 [shape = 'u32[]', space=smem, size = 0x4, offset = 0x4, fixed_abs, tag = 'smem constant byte address 0x4 - core index']
  #allocation1 [shape = 'u32[144,128]{1,0:T(1,128)}', space=vmem, size = 0x12000, scoped, tag = 'internal scratch']
  %s0 = inlined_call_operand.vmem [shape: bf16[32,128], index: 0, kind: input, shape index: {}]
  %s1 = inlined_call_operand.vmem [shape: bf16[64,32], index: 1, kind: input, shape index: {}]
  %s2 = inlined_call_operand.vmem [shape: f32[64,1], index: 2, kind: input, shape index: {}]
  %s3 = inlined_call_operand.vmem [shape: bf16[9,64], index: 3, kind: input, shape index: {}]
  %s4 = inlined_call_operand.vmem [shape: f32[9,1], index: 4, kind: input, shape index: {}]
  %s5 = inlined_call_operand.hbm [shape: f32[9,128], index: 5, kind: output, shape index: {}]
  %s6 = sld [smem:[#allocation0]]
  $region30: #{tpu_custom_call.1} parent=0
    _
  %s8 = ssub.s32 1, %s6
  %s9 = scalar_select 0, %s8, %s6
  $region1: #{tpu_custom_call.1} parent=0
    #allocation2 [shape = 'u8[8192]{0}', space=vmem, size = 0x2000, scoped, tag = 'output window, operand 0, single buffered']
    #allocation3 [shape = 's32[1]{0}', space=sflag, size = 0x4, scoped, tag = 'scoped memory for tpu_custom_call.1']
    %10 = vsyncpa [#allocation3], 0
    // Predicated region
    $region2: #{tpu_custom_call.1} parent=1 // pred_check
      _
    $region3: #{tpu_custom_call.1} parent=1 // pred_check_branch
      %12 = sbr.rel (0) target = $region5
    $region4: #{tpu_custom_call.1} parent=1 // pred_region
      _
    $region5: #{tpu_custom_call.1} parent=1 // pred_fallthru
      _
    // Predicated region
    $region6: #{tpu_custom_call.1} parent=1 // pred_check
      _
    $region7: #{tpu_custom_call.1} parent=1 // pred_check_branch
      %14 = sbr.rel (0) target = $region9
    $region8: #{tpu_custom_call.1} parent=1 // pred_region
      _
    $region9: #{tpu_custom_call.1} parent=1 // pred_fallthru
      _
    // Predicated region
    $region10: #{tpu_custom_call.1} parent=1 // pred_check
      _
    $region11: #{tpu_custom_call.1} parent=1 // pred_check_branch
      %16 = sbr.rel (0) target = $region13
    $region12: #{tpu_custom_call.1} parent=1 // pred_region
      _
    $region13: #{tpu_custom_call.1} parent=1 // pred_fallthru
      _
    // Predicated region
    $region14: #{tpu_custom_call.1} parent=1 // pred_check
      _
    $region15: #{tpu_custom_call.1} parent=1 // pred_check_branch
      %18 = sbr.rel (0) target = $region17
    $region16: #{tpu_custom_call.1} parent=1 // pred_region
      _
    $region17: #{tpu_custom_call.1} parent=1 // pred_fallthru
      _
    // Predicated region
    $region18: #{tpu_custom_call.1} parent=1 // pred_check
      _
    $region19: #{tpu_custom_call.1} parent=1 // pred_check_branch
      %20 = sbr.rel (0) target = $region21
    $region20: #{tpu_custom_call.1} parent=1 // pred_region
      _
    $region21: #{tpu_custom_call.1} parent=1 // pred_fallthru
      _
    %v22 = vld [vmem:[%s1] sm:$0xf]
    %v23 = vld [vmem:[%s1 + $0x4] sm:$0xf]
    %v24 = vld [vmem:[%s1 + $0x8] sm:$0xf]
    %v25 = vld [vmem:[%s1 + $0xc] sm:$0xf]
    %v26 = vld [vmem:[%s1 + $0x10] sm:$0xf]
    %v27 = vld [vmem:[%s1 + $0x14] sm:$0xf]
    %v28 = vld [vmem:[%s1 + $0x18] sm:$0xf]
    %v29 = vld [vmem:[%s1 + $0x1c] sm:$0xf]
    %v30 = vld [vmem:[%s0] sm:$0xf]
    %v31 = vld [vmem:[%s0 + $0x4] sm:$0xf]
    %v32 = vld [vmem:[%s0 + $0x8] sm:$0xf]
    %v33 = vld [vmem:[%s0 + $0xc] sm:$0xf]
    %v34 = vld [vmem:[%s2] sm:$0xff]
    %v35 = vld [vmem:[%s2 + $0x8] sm:$0xff]
    %v36 = vld [vmem:[%s2 + $0x10] sm:$0xff]
    %v37 = vld [vmem:[%s2 + $0x18] sm:$0xff]
    %v38 = vld [vmem:[%s2 + $0x20] sm:$0xff]
    %v39 = vld [vmem:[%s2 + $0x28] sm:$0xff]
    %v40 = vld [vmem:[%s2 + $0x30] sm:$0xff]
    %v41 = vld [vmem:[%s2 + $0x38] sm:$0xff]
    %43 = vset.pattern.permute.xlu0 0
    %44 = vperm.xlu0 %43, %v34
    %v45 = vpop.permute.xlu0 %44
    %48 = vset.pattern.permute.xlu0 0
    %49 = vperm.xlu0 %48, %v35
    %v50 = vpop.permute.xlu0 %49
    %53 = vset.pattern.permute.xlu0 0
    %54 = vperm.xlu0 %53, %v36
    %v55 = vpop.permute.xlu0 %54
    %58 = vset.pattern.permute.xlu0 0
    %59 = vperm.xlu0 %58, %v37
    %v60 = vpop.permute.xlu0 %59
    %63 = vset.pattern.permute.xlu0 0
    %64 = vperm.xlu0 %63, %v38
    %v65 = vpop.permute.xlu0 %64
    %68 = vset.pattern.permute.xlu0 0
    %69 = vperm.xlu0 %68, %v39
    %v70 = vpop.permute.xlu0 %69
    %73 = vset.pattern.permute.xlu0 0
    %74 = vperm.xlu0 %73, %v40
    %v75 = vpop.permute.xlu0 %74
    %78 = vset.pattern.permute.xlu0 0
    %79 = vperm.xlu0 %78, %v41
    %v80 = vpop.permute.xlu0 %79
    %v90 = vunpack.c.l.b16 %v22
    %v91 = vunpack.c.l.b16 %v23
    %v92 = vunpack.c.l.b16 %v24
    %v93 = vunpack.c.l.b16 %v25
    %v94 = vunpack.c.l.b16 %v26
    %v95 = vunpack.c.l.b16 %v27
    %v96 = vunpack.c.l.b16 %v28
    %v97 = vunpack.c.l.b16 %v29
    %v98 = vpack.c.b16 %v91, %v90
    %v99 = vpack.c.b16 %v93, %v92
    %v100 = vpack.c.b16 %v95, %v94
    %v101 = vpack.c.b16 %v97, %v96
    %v106 = vunpack.c.l.b16 %v30
    %v107 = vunpack.c.l.b16 %v31
    %v108 = vunpack.c.l.b16 %v32
    %v109 = vunpack.c.l.b16 %v33
    %v110 = vpack.c.b16 %v107, %v106
    %v111 = vpack.c.b16 %v109, %v108
    %vm114 = vcmask 261120
    %v116 = vsel %vm114, %v98, 0
    %v119 = vsel %vm114, %v99, 0
    %v122 = vsel %vm114, %v100, 0
    %v125 = vsel %vm114, %v101, 0
    %127 = vmatprep.subr.bf16.mxu0 0
    %128 = vmatpush1.bf16.msra.mxu0 %v110
    %129 = vmatprep.subr.bf16.mxu0 0
    %130 = vmatpush1.bf16.msra.mxu0 %v111
    %131 = vmatprep.subr.bf16.mxu0 0
    %132 = vmatpush1.bf16.msra.mxu0 0
    %133 = vmatprep.subr.bf16.mxu0 0
    %134 = vmatpush1.bf16.msra.mxu0 0
    %135 = vmatprep.subr.bf16.mxu0 0
    %136 = vmatpush1.bf16.msra.mxu0 0
    %137 = vmatprep.subr.bf16.mxu0 0
    %138 = vmatpush1.bf16.msra.mxu0 0
    %139 = vmatprep.subr.bf16.mxu0 0
    %140 = vmatpush1.bf16.msra.mxu0 0
    %141 = vmatprep.subr.bf16.mxu0 0
    %142 = vmatpush1.bf16.msra.mxu0 0
    %143 = vmatprep.subr.bf16.mxu0 0
    %144 = vmatpush1.bf16.msra.mxu0 0
    %145 = vmatprep.subr.bf16.mxu0 0
    %146 = vmatpush1.bf16.msra.mxu0 0
    %147 = vmatprep.subr.bf16.mxu0 0
    %148 = vmatpush1.bf16.msra.mxu0 0
    %149 = vmatprep.subr.bf16.mxu0 0
    %150 = vmatpush1.bf16.msra.mxu0 0
    %151 = vmatprep.subr.bf16.mxu0 0
    %152 = vmatpush1.bf16.msra.mxu0 0
    %153 = vmatprep.subr.bf16.mxu0 0
    %154 = vmatpush1.bf16.msra.mxu0 0
    %155 = vmatprep.subr.bf16.mxu0 0
    %156 = vmatpush1.bf16.msra.mxu0 0
    %157 = vmatprep.subr.bf16.mxu0 0
    %158 = vmatpush1.bf16.msra.mxu0 0
    %159 = vmatprep.mubr.bf16.mxu0 0
    %160 = vmatmul.mubr.bf16.gmra.mrb[0].mxu0 %v116
    %v161 = vpop.f32.mrb[0].mxu0
    %v162 = vadd.f32 %v45, %v161
    %v163 = vpop.f32.mrb[0].mxu0
    %v164 = vpop.f32.mrb[0].mxu0
    %v165 = vadd.f32 %v50, %v164
    %v166 = vpop.f32.mrb[0].mxu0
    %167 = vmatprep.mubr.bf16.mxu0 0
    %168 = vmatmul.mubr.bf16.gmra.mrb[0].mxu0 %v119
    %v169 = vpop.f32.mrb[0].mxu0
    %v170 = vadd.f32 %v55, %v169
    %v171 = vpop.f32.mrb[0].mxu0
    %v172 = vpop.f32.mrb[0].mxu0
    %v173 = vadd.f32 %v60, %v172
    %v174 = vpop.f32.mrb[0].mxu0
    %175 = vmatprep.mubr.bf16.mxu0 0
    %176 = vmatmul.mubr.bf16.gmra.mrb[0].mxu0 %v122
    %v177 = vpop.f32.mrb[0].mxu0
    %v178 = vadd.f32 %v65, %v177
    %v179 = vpop.f32.mrb[0].mxu0
    %v180 = vpop.f32.mrb[0].mxu0
    %v181 = vadd.f32 %v70, %v180
    %v182 = vpop.f32.mrb[0].mxu0
    %183 = vmatprep.mubr.bf16.mxu0 0
    %184 = vmatmul.mubr.bf16.gmra.mrb[0].mxu0 %v125
    %v185 = vpop.f32.mrb[0].mxu0
    %v186 = vadd.f32 %v75, %v185
    %v187 = vpop.f32.mrb[0].mxu0
    %v188 = vpop.f32.mrb[0].mxu0
    %v189 = vadd.f32 %v80, %v188
    %v190 = vpop.f32.mrb[0].mxu0
    %191 = vdwg.mxu0
    %v192 = vmax.f32 %v162, 0.0
    %v193 = vmax.f32 %v165, 0.0
    %v194 = vmax.f32 %v170, 0.0
    %v195 = vmax.f32 %v173, 0.0
    %v196 = vmax.f32 %v178, 0.0
    %v197 = vmax.f32 %v181, 0.0
    %v198 = vmax.f32 %v186, 0.0
    %v199 = vmax.f32 %v189, 0.0
    %v200 = vld [vmem:[%s3] sm:$0xf]
    %v201 = vld [vmem:[%s3 + $0x4] sm:$0x1]
    %v202 = vpack.c.bf16 %v193, %v192
    %v203 = vpack.c.bf16 %v195, %v194
    %v204 = vpack.c.bf16 %v197, %v196
    %v205 = vpack.c.bf16 %v199, %v198
    %v206 = vld [vmem:[%s4] sm:$0xff]
    %v207 = vld [vmem:[%s4 + $0x8] sm:$0x1]
    %209 = vset.pattern.permute.xlu0 0
    %210 = vperm.xlu0 %209, %v206
    %v211 = vpop.permute.xlu0 %210
    %214 = vset.pattern.permute.xlu0 0
    %215 = vperm.xlu0 %214, %v207
    %v216 = vpop.permute.xlu0 %215
    %v220 = vunpack.c.l.b16 %v200
    %v221 = vunpack.c.l.b16 %v201
    %v222 = vpack.c.b16 %v221, %v220
    %vm223 = vcmask 523264
    %v225 = vsel %vm223, %v222, 0
    %227 = vmatprep.subr.bf16.mxu0 0
    %228 = vmatpush1.bf16.msra.mxu0 %v202
    %229 = vmatprep.subr.bf16.mxu0 0
    %230 = vmatpush1.bf16.msra.mxu0 %v203
    %231 = vmatprep.subr.bf16.mxu0 0
    %232 = vmatpush1.bf16.msra.mxu0 %v204
    %233 = vmatprep.subr.bf16.mxu0 0
    %234 = vmatpush1.bf16.msra.mxu0 %v205
    %235 = vmatprep.subr.bf16.mxu0 0
    %236 = vmatpush1.bf16.msra.mxu0 0
    %237 = vmatprep.subr.bf16.mxu0 0
    %238 = vmatpush1.bf16.msra.mxu0 0
    %239 = vmatprep.subr.bf16.mxu0 0
    %240 = vmatpush1.bf16.msra.mxu0 0
    %241 = vmatprep.subr.bf16.mxu0 0
    %242 = vmatpush1.bf16.msra.mxu0 0
    %243 = vmatprep.subr.bf16.mxu0 0
    %244 = vmatpush1.bf16.msra.mxu0 0
    %245 = vmatprep.subr.bf16.mxu0 0
    %246 = vmatpush1.bf16.msra.mxu0 0
    %247 = vmatprep.subr.bf16.mxu0 0
    %248 = vmatpush1.bf16.msra.mxu0 0
    %249 = vmatprep.subr.bf16.mxu0 0
    %250 = vmatpush1.bf16.msra.mxu0 0
    %251 = vmatprep.subr.bf16.mxu0 0
    %252 = vmatpush1.bf16.msra.mxu0 0
    %253 = vmatprep.subr.bf16.mxu0 0
    %254 = vmatpush1.bf16.msra.mxu0 0
    %255 = vmatprep.subr.bf16.mxu0 0
    %256 = vmatpush1.bf16.msra.mxu0 0
    %257 = vmatprep.subr.bf16.mxu0 0
    %258 = vmatpush1.bf16.msra.mxu0 0
    %259 = vmatprep.mubr.bf16.mxu0 0
    %260 = vmatmul.mubr.bf16.gmra.mrb[0].mxu0 %v225
    %v261 = vpop.f32.mrb[0].mxu0
    %v262 = vadd.f32 %v211, %v261
    %v263 = vpop.f32.mrb[0].mxu0
    %v264 = vpop.f32.mrb[0].mxu0
    %v265 = vadd.f32 %v216, %v264
    %v266 = vpop.f32.mrb[0].mxu0
    %267 = vdwg.mxu0
    %vm268 = vcmask 1040384
    %v269 = vsel %vm268, %v265, -inf
    %v270 = vmax.f32 %v262, %v269
    %v271 = vrot.slane %v270, 4
    %v272 = vmax.f32 %v270, %v271
    %v273 = vrot.slane %v272, 2
    %v274 = vmax.f32 %v272, %v273
    %v275 = vrot.slane %v274, 1
    %v276 = vmax.f32 %v274, %v275
    %v277 = vsub.f32 %v262, %v276
    %v278 = vsub.f32 %v265, %v276
    %v279 = vmul.f32 %v277, 1.442695
    %v280 = vpow.pop %v279
    %v281 = vmul.f32 %v278, 1.442695
    %v282 = vpow.pop %v281
    %v283 = vsel %vm268, %v282, 0.0
    %v284 = vadd.f32 %v280, %v283
    %v285 = vrot.slane %v284, 4
    %v286 = vadd.f32 %v284, %v285
    %v287 = vrot.slane %v286, 2
    %v288 = vadd.f32 %v286, %v287
    %v289 = vrot.slane %v288, 1
    %v290 = vadd.f32 %v288, %v289
    %v291 = vrcp.pop %v290
    %v292 = vmul.f32 %v280, %v291
    %v293 = vmul.f32 %v282, %v291
    %294 = vst [vmem:[#allocation2] sm:$0xff] %v292
    %295 = vst [vmem:[#allocation2 + $0x8] sm:$0x1] %v293
    // Predicated region
    $region22: #{tpu_custom_call.1} parent=1 // pred_check
      _
    $region23: #{tpu_custom_call.1} parent=1 // pred_check_branch
      %297 = sbr.rel (0) target = $region25
    $region24: #{tpu_custom_call.1} parent=1 // pred_region
      %s299 = ssub.s32 256, 256
      %300 = vsyncadd [#allocation3], %s299
      %s301 = sshll.u32 [#allocation2], 4
      %s302 = int_to_ptr.vmem [resolvable:$true] %s301
      %307 = dma.vmem_to_hbm [thread:$0]  %s302, 256, %s5, [#allocation3], 128, 128, 8
    $region25: #{tpu_custom_call.1} parent=1 // pred_fallthru
      _
    // Predicated region
    $region26: #{tpu_custom_call.1} parent=1 // pred_check
      _
    $region27: #{tpu_custom_call.1} parent=1 // pred_check_branch
      %309 = sbr.rel (0) target = $region29
    $region28: #{tpu_custom_call.1} parent=1 // pred_region
      %310 = dma.done [#allocation3], 256
    $region29: #{tpu_custom_call.1} parent=1 // pred_fallthru
      _
    %311 = vsyncpa [#allocation3], 1

</llo_original>
